<compile_context>
chip_gen: v7x
topology: tpu7x:2x2x1
jax: 0.10.0
libtpu: 0.0.40
codegen_flags: <defaults>
</compile_context>

<pallas_src>
import functools
import math

import jax
import jax.numpy as jnp
from jax.experimental import pallas as pl
from jax.experimental.pallas import tpu as pltpu


def _mha_map_kernel(q_ref, k_ref, wqt_ref, wk_ref, bq_ref, bk_ref, o_ref, *,
                    num_heads, head_dim, norm_fact, hw, hw_pad, mm_dtype):
    # q_ref:   [Qt, C]            (batch squeezed, Q tiled by the grid)
    # k_ref:   [C, HW_pad]        (contiguous slab of the original NCHW layout)
    # wqt_ref: [C, hidden]        (pre-transposed q_linear weight)
    # wk_ref:  [hidden, C]        (k_linear weight as-is)
    # bq_ref:  [1, hidden]        bk_ref: [hidden, 1]
    # o_ref:   [Qt, num_heads*HW_pad]
    def mxu_dot(a, b):
        return jnp.dot(a.astype(mm_dtype), b.astype(mm_dtype),
                       preferred_element_type=jnp.float32)

    q = q_ref[...]
    k = k_ref[...]

    # q projection (q_linear) + normalize_fact:  [Qt, hidden]
    qp = (mxu_dot(q, wqt_ref[...]) + bq_ref[...]) * norm_fact

    # k projection (1x1 conv == channel linear), computed transposed:
    #   kpT = Wk @ k + bk  -> [hidden, HW_pad]; bias broadcasts along lanes.
    kpT = mxu_dot(wk_ref[...], k) + bk_ref[...]

    qt = qp.shape[0]

    # Lane-iota head masks over the hidden axis: selects head n's columns of qp
    # with a vselect instead of an (8/32-lane) slice, so every score matmul
    # contracts over the full `hidden` depth with no cross-lane relayout.
    lane = jax.lax.broadcasted_iota(jnp.int32, qp.shape, 1)
    if hw_pad != hw:
        col = jax.lax.broadcasted_iota(jnp.int32, (qt, hw_pad), 1)
        valid = col < hw

    blocks = []
    for n in range(num_heads):
        in_head = (lane >= n * head_dim) & (lane < (n + 1) * head_dim)
        qn = jnp.where(in_head, qp, 0.0)          # [Qt, hidden], zero outside head n
        sn = mxu_dot(qn, kpT)                      # [Qt, HW_pad], depth-`hidden` MXU dot
        if hw_pad != hw:
            # Padded spatial columns must not enter the softmax denominator.
            sn = jnp.where(valid, sn, -1e30)
        blocks.append(sn)
    # Head-major lane concat (each block 128-aligned) matches torch's flatten(2).
    s = jnp.concatenate(blocks, axis=-1)           # [Qt, num_heads*HW_pad]

    # softmax over the flattened (heads, H, W) axis; single store of the block.
    m = jnp.max(s, axis=-1, keepdims=True)
    e = jnp.exp(s - m)
    denom = jnp.sum(e, axis=-1, keepdims=True)     # [Qt, 1] -> exact divide is free
    o_ref[...] = (e * (1.0 / denom)).astype(o_ref.dtype)
    # TODO(synk): optional `mask` (masked_fill with -inf before softmax) from the
    #             PyTorch module is not wired in; dropout(p=0) is an identity.


def mha_attention_map(q, k, wq, bq, wk, bk, num_heads, *,
                      q_block=128, use_bf16_matmul=False):
    """q: [B, Q, C] f32, k: [B, C, H, W] f32 (NCHW). Returns [B, Q, N, H, W]."""
    B, Q, C = q.shape
    _, Ck, H, W = k.shape
    assert Ck == C
    hidden = wq.shape[0]
    assert hidden % num_heads == 0
    head_dim = hidden // num_heads
    HW = H * W
    HW_pad = -(-HW // 128) * 128                  # lane-align each head's block
    norm_fact = float(hidden / num_heads) ** (-0.5)

    # Q tiling (second "parallel" grid axis): tile is a sublane multiple.
    q_blk = q_block if Q >= q_block else -(-Q // 8) * 8
    Q_pad = -(-Q // q_blk) * q_blk

    # Layout prep: pure reshapes + tiny constant-weight transpose; zero padding
    # only when shapes are unaligned (padded HW columns are masked in-kernel,
    # padded query rows are stripped below).  No NCHW feature-map transpose.
    k2d = k.reshape(B, C, HW)
    if HW_pad != HW:
        k2d = jnp.pad(k2d, ((0, 0), (0, 0), (0, HW_pad - HW)))
    qin = q if Q_pad == Q else jnp.pad(q, ((0, 0), (0, Q_pad - Q), (0, 0)))
    wqt = wq.T                                     # [C, hidden]
    bq2 = bq.reshape(1, hidden)
    bk2 = bk.reshape(hidden, 1)

    # bf16 operands use the native MXU path on v6e/v7x; default f32 keeps the
    # 1e-5 tolerance.  Accumulation is always f32 (preferred_element_type).
    mm_dtype = jnp.bfloat16 if use_bf16_matmul else jnp.float32

    kernel = functools.partial(
        _mha_map_kernel,
        num_heads=num_heads, head_dim=head_dim, norm_fact=norm_fact,
        hw=HW, hw_pad=HW_pad, mm_dtype=mm_dtype,
    )

    out_flat = pl.pallas_call(
        kernel,
        out_shape=jax.ShapeDtypeStruct((B, Q_pad, num_heads * HW_pad), jnp.float32),
        grid_spec=pltpu.PrefetchScalarGridSpec(
            num_scalar_prefetch=0,
            grid=(B, Q_pad // q_blk),
            in_specs=[
                pl.BlockSpec((None, q_blk, C), lambda b, i: (b, i, 0)),     # q tile
                pl.BlockSpec((None, C, HW_pad), lambda b, i: (b, 0, 0)),    # k slab
                pl.BlockSpec((C, hidden), lambda b, i: (0, 0)),             # wq^T
                pl.BlockSpec((hidden, C), lambda b, i: (0, 0)),             # wk
                pl.BlockSpec((1, hidden), lambda b, i: (0, 0)),             # bq
                pl.BlockSpec((hidden, 1), lambda b, i: (0, 0)),             # bk
            ],
            out_specs=pl.BlockSpec((None, q_blk, num_heads * HW_pad),
                                   lambda b, i: (b, i, 0)),
        ),
        compiler_params=pltpu.CompilerParams(
            dimension_semantics=("parallel", "parallel"),
            vmem_limit_bytes=32 * 1024 * 1024),    # above v5e's 16 MiB scoped default
    )(qin, k2d, wqt, wk, bq2, bk2)

    # TODO(synk): for downstream consumers that accept bf16 attention weights,
    #             emit the output in bf16 to halve the dominant HBM writeback.
    out = out_flat.reshape(B, Q_pad, num_heads, HW_pad)[:, :Q, :, :HW]
    return out.reshape(B, Q, num_heads, H, W)


def _reference(q, k, wq, bq, wk, bk, num_heads):
    """Pure-JAX reference mirroring the PyTorch forward."""
    B, Q, C = q.shape
    _, _, H, W = k.shape
    hidden = wq.shape[0]
    hd = hidden // num_heads
    norm = float(hidden / num_heads) ** (-0.5)
    qp = q @ wq.T + bq                                            # [B, Q, hidden]
    kp = jnp.einsum('bchw,dc->bdhw', k, wk) + bk[None, :, None, None]
    qh = qp.reshape(B, Q, num_heads, hd)
    kh = kp.reshape(B, num_heads, hd, H, W)
    w = jnp.einsum('bqnc,bnchw->bqnhw', qh * norm, kh)
    wf = jax.nn.softmax(w.reshape(B, Q, -1), axis=-1)
    return wf.reshape(B, Q, num_heads, H, W)


if __name__ == "__main__":
    key = jax.random.PRNGKey(0)
    B, Q, query_dim, hidden_dim, num_heads = 2, 8, 32, 32, 4
    H, W = 16, 16

    k_q, k_k, k_wq, k_wk = jax.random.split(key, 4)
    q_in = jax.random.normal(k_q, (B, Q, query_dim), dtype=jnp.float32)
    k_in = jax.random.normal(k_k, (B, query_dim, H, W), dtype=jnp.float32)

    # Deterministic parameter init matching the module's __init__:
    # xavier_uniform_ weights, zero biases.
    bound = math.sqrt(6.0 / (query_dim + hidden_dim))
    wq = jax.random.uniform(k_wq, (hidden_dim, query_dim), jnp.float32, -bound, bound)
    wk = jax.random.uniform(k_wk, (hidden_dim, query_dim), jnp.float32, -bound, bound)
    bq = jnp.zeros((hidden_dim,), jnp.float32)
    bk = jnp.zeros((hidden_dim,), jnp.float32)

    # Aligned path (HW multiple of 128).
    out = jax.block_until_ready(
        mha_attention_map(q_in, k_in, wq, bq, wk, bk, num_heads))
    ref = _reference(q_in, k_in, wq, bq, wk, bk, num_heads)
    assert out.shape == (B, Q, num_heads, H, W)
    assert jnp.allclose(out, ref, atol=1e-5, rtol=1e-5), "mismatch (aligned path)"

    # Unaligned path: HW not a multiple of 128 and Q not a multiple of 8
    # exercises the lane padding + pre-softmax masking and the Q pad/strip.
    H2, W2, Q2 = 12, 12, 6
    q2 = jax.random.normal(jax.random.PRNGKey(1), (B, Q2, query_dim), jnp.float32)
    k2 = jax.random.normal(jax.random.PRNGKey(2), (B, query_dim, H2, W2), jnp.float32)
    out2 = jax.block_until_ready(
        mha_attention_map(q2, k2, wq, bq, wk, bk, num_heads))
    ref2 = _reference(q2, k2, wq, bq, wk, bk, num_heads)
    assert out2.shape == (B, Q2, num_heads, H2, W2)
    assert jnp.allclose(out2, ref2, atol=1e-5, rtol=1e-5), "mismatch (padded path)"

    print("KERNEL_OK")
</pallas_src>

<mosaic_0001>
module attributes {stable_mosaic.version = 11 : i64} {
  func.func @_mha_map_kernel(%arg0: i32, %arg1: i32, %arg2: memref<1x8x32xf32, #tpu.memory_space<vmem>>, %arg3: memref<1x32x256xf32, #tpu.memory_space<vmem>>, %arg4: memref<32x32xf32, #tpu.memory_space<vmem>>, %arg5: memref<32x32xf32, #tpu.memory_space<vmem>>, %arg6: memref<1x32xf32, #tpu.memory_space<vmem>>, %arg7: memref<32x1xf32, #tpu.memory_space<vmem>>, %arg8: memref<1x8x1024xf32, #tpu.memory_space<vmem>>) attributes {dimension_semantics = [#tpu.dimension_semantics<parallel>, #tpu.dimension_semantics<parallel>], iteration_bounds = array<i64: 2, 1>, scalar_prefetch = 0 : i64, scratch_operands = 0 : i64, tpu.core_type = #tpu.core_type<tc>, window_params = [{transform_indices = @transform_0, window_bounds = array<i64: 1, 8, 32>}, {transform_indices = @transform_1, window_bounds = array<i64: 1, 32, 256>}, {pipeline_mode = #tpu.pipeline_mode<synchronous>, transform_indices = @transform_2, window_bounds = array<i64: 32, 32>}, {pipeline_mode = #tpu.pipeline_mode<synchronous>, transform_indices = @transform_3, window_bounds = array<i64: 32, 32>}, {pipeline_mode = #tpu.pipeline_mode<synchronous>, transform_indices = @transform_4, window_bounds = array<i64: 1, 32>}, {pipeline_mode = #tpu.pipeline_mode<synchronous>, transform_indices = @transform_5, window_bounds = array<i64: 32, 1>}, {transform_indices = @transform_6, window_bounds = array<i64: 1, 8, 1024>}]} {
    %c0 = arith.constant 0 : index
    %c0_0 = arith.constant 0 : index
    %c0_1 = arith.constant 0 : index
    %0 = vector.load %arg2[%c0, %c0_0, %c0_1] : memref<1x8x32xf32, #tpu.memory_space<vmem>>, vector<1x8x32xf32>
    %1 = vector.shape_cast %0 : vector<1x8x32xf32> to vector<8x32xf32>
    %c0_2 = arith.constant 0 : index
    %c0_3 = arith.constant 0 : index
    %c0_4 = arith.constant 0 : index
    %2 = vector.load %arg3[%c0_2, %c0_3, %c0_4] : memref<1x32x256xf32, #tpu.memory_space<vmem>>, vector<1x32x256xf32>
    %3 = vector.shape_cast %2 : vector<1x32x256xf32> to vector<32x256xf32>
    %c0_5 = arith.constant 0 : index
    %c0_6 = arith.constant 0 : index
    %4 = vector.load %arg4[%c0_5, %c0_6] : memref<32x32xf32, #tpu.memory_space<vmem>>, vector<32x32xf32>
    %cst = arith.constant dense<0.000000e+00> : vector<8x32xf32>
    %5 = tpu.matmul %1, %4, %cst {dimension_numbers = #tpu.dot_dimension_numbers<[1], [0], [0], [1], [0, 0, 1, 1], [], []>} : vector<8x32xf32>, vector<32x32xf32>, vector<8x32xf32> -> vector<8x32xf32>
    %c0_7 = arith.constant 0 : index
    %c0_8 = arith.constant 0 : index
    %6 = vector.load %arg6[%c0_7, %c0_8] : memref<1x32xf32, #tpu.memory_space<vmem>>, vector<1x32xf32>
    %7 = vector.broadcast %6 : vector<1x32xf32> to vector<8x32xf32>
    %8 = arith.addf %5, %7 : vector<8x32xf32>
    %cst_9 = arith.constant 0.353553385 : f32
    %9 = vector.broadcast %cst_9 : f32 to vector<8x32xf32>
    %10 = arith.mulf %8, %9 : vector<8x32xf32>
    %c0_10 = arith.constant 0 : index
    %c0_11 = arith.constant 0 : index
    %11 = vector.load %arg5[%c0_10, %c0_11] : memref<32x32xf32, #tpu.memory_space<vmem>>, vector<32x32xf32>
    %cst_12 = arith.constant dense<0.000000e+00> : vector<32x256xf32>
    %12 = tpu.matmul %11, %3, %cst_12 {dimension_numbers = #tpu.dot_dimension_numbers<[1], [0], [0], [1], [0, 0, 1, 1], [], []>} : vector<32x32xf32>, vector<32x256xf32>, vector<32x256xf32> -> vector<32x256xf32>
    %c0_13 = arith.constant 0 : index
    %c0_14 = arith.constant 0 : index
    %13 = vector.load %arg7[%c0_13, %c0_14] : memref<32x1xf32, #tpu.memory_space<vmem>>, vector<32x1xf32>
    %14 = vector.broadcast %13 : vector<32x1xf32> to vector<32x256xf32>
    %15 = arith.addf %12, %14 : vector<32x256xf32>
    %16 = tpu.iota {dimensions = array<i32: 1>} : vector<8x32xi32>
    %c0_i32 = arith.constant 0 : i32
    %17 = vector.broadcast %c0_i32 : i32 to vector<8x32xi32>
    %18 = arith.cmpi sge, %16, %17 : vector<8x32xi32>
    %c8_i32 = arith.constant 8 : i32
    %19 = vector.broadcast %c8_i32 : i32 to vector<8x32xi32>
    %20 = arith.cmpi slt, %16, %19 : vector<8x32xi32>
    %21 = arith.andi %18, %20 : vector<8x32xi1>
    %cst_15 = arith.constant 0.000000e+00 : f32
    %22 = vector.broadcast %cst_15 : f32 to vector<8x32xf32>
    %23 = arith.select %21, %10, %22 : vector<8x32xi1>, vector<8x32xf32>
    %cst_16 = arith.constant dense<0.000000e+00> : vector<8x256xf32>
    %24 = tpu.matmul %23, %15, %cst_16 {dimension_numbers = #tpu.dot_dimension_numbers<[1], [0], [0], [1], [0, 0, 1, 1], [], []>} : vector<8x32xf32>, vector<32x256xf32>, vector<8x256xf32> -> vector<8x256xf32>
    %c8_i32_17 = arith.constant 8 : i32
    %25 = vector.broadcast %c8_i32_17 : i32 to vector<8x32xi32>
    %26 = arith.cmpi sge, %16, %25 : vector<8x32xi32>
    %c16_i32 = arith.constant 16 : i32
    %27 = vector.broadcast %c16_i32 : i32 to vector<8x32xi32>
    %28 = arith.cmpi slt, %16, %27 : vector<8x32xi32>
    %29 = arith.andi %26, %28 : vector<8x32xi1>
    %cst_18 = arith.constant 0.000000e+00 : f32
    %30 = vector.broadcast %cst_18 : f32 to vector<8x32xf32>
    %31 = arith.select %29, %10, %30 : vector<8x32xi1>, vector<8x32xf32>
    %cst_19 = arith.constant dense<0.000000e+00> : vector<8x256xf32>
    %32 = tpu.matmul %31, %15, %cst_19 {dimension_numbers = #tpu.dot_dimension_numbers<[1], [0], [0], [1], [0, 0, 1, 1], [], []>} : vector<8x32xf32>, vector<32x256xf32>, vector<8x256xf32> -> vector<8x256xf32>
    %c16_i32_20 = arith.constant 16 : i32
    %33 = vector.broadcast %c16_i32_20 : i32 to vector<8x32xi32>
    %34 = arith.cmpi sge, %16, %33 : vector<8x32xi32>
    %c24_i32 = arith.constant 24 : i32
    %35 = vector.broadcast %c24_i32 : i32 to vector<8x32xi32>
    %36 = arith.cmpi slt, %16, %35 : vector<8x32xi32>
    %37 = arith.andi %34, %36 : vector<8x32xi1>
    %cst_21 = arith.constant 0.000000e+00 : f32
    %38 = vector.broadcast %cst_21 : f32 to vector<8x32xf32>
    %39 = arith.select %37, %10, %38 : vector<8x32xi1>, vector<8x32xf32>
    %cst_22 = arith.constant dense<0.000000e+00> : vector<8x256xf32>
    %40 = tpu.matmul %39, %15, %cst_22 {dimension_numbers = #tpu.dot_dimension_numbers<[1], [0], [0], [1], [0, 0, 1, 1], [], []>} : vector<8x32xf32>, vector<32x256xf32>, vector<8x256xf32> -> vector<8x256xf32>
    %c24_i32_23 = arith.constant 24 : i32
    %41 = vector.broadcast %c24_i32_23 : i32 to vector<8x32xi32>
    %42 = arith.cmpi sge, %16, %41 : vector<8x32xi32>
    %c32_i32 = arith.constant 32 : i32
    %43 = vector.broadcast %c32_i32 : i32 to vector<8x32xi32>
    %44 = arith.cmpi slt, %16, %43 : vector<8x32xi32>
    %45 = arith.andi %42, %44 : vector<8x32xi1>
    %cst_24 = arith.constant 0.000000e+00 : f32
    %46 = vector.broadcast %cst_24 : f32 to vector<8x32xf32>
    %47 = arith.select %45, %10, %46 : vector<8x32xi1>, vector<8x32xf32>
    %cst_25 = arith.constant dense<0.000000e+00> : vector<8x256xf32>
    %48 = tpu.matmul %47, %15, %cst_25 {dimension_numbers = #tpu.dot_dimension_numbers<[1], [0], [0], [1], [0, 0, 1, 1], [], []>} : vector<8x32xf32>, vector<32x256xf32>, vector<8x256xf32> -> vector<8x256xf32>
    %49 = tpu.concatenate %24, %32, %40, %48 in 1 : vector<8x256xf32>, vector<8x256xf32>, vector<8x256xf32>, vector<8x256xf32> -> vector<8x1024xf32>
    %cst_26 = arith.constant dense<0xFF800000> : vector<8xf32>
    %50 = vector.multi_reduction <maximumf>, %49, %cst_26 [1] : vector<8x1024xf32> to vector<8xf32>
    %51 = vector.shape_cast %50 : vector<8xf32> to vector<8x1xf32>
    %52 = vector.broadcast %51 : vector<8x1xf32> to vector<8x1024xf32>
    %53 = arith.subf %49, %52 : vector<8x1024xf32>
    %54 = math.exp %53 : vector<8x1024xf32>
    %cst_27 = arith.constant dense<0.000000e+00> : vector<8xf32>
    %55 = vector.multi_reduction <add>, %54, %cst_27 [1] : vector<8x1024xf32> to vector<8xf32>
    %56 = vector.shape_cast %55 : vector<8xf32> to vector<8x1xf32>
    %cst_28 = arith.constant 1.000000e+00 : f32
    %57 = vector.broadcast %cst_28 : f32 to vector<8x1xf32>
    %58 = arith.divf %57, %56 : vector<8x1xf32>
    %59 = vector.broadcast %58 : vector<8x1xf32> to vector<8x1024xf32>
    %60 = arith.mulf %54, %59 : vector<8x1024xf32>
    %c0_29 = arith.constant 0 : index
    %c0_30 = arith.constant 0 : index
    %c0_31 = arith.constant 0 : index
    %61 = vector.load %arg8[%c0_29, %c0_30, %c0_31] : memref<1x8x1024xf32, #tpu.memory_space<vmem>>, vector<1x8x1024xf32>
    %62 = vector.shape_cast %61 : vector<1x8x1024xf32> to vector<8x1024xf32>
    %63 = vector.shape_cast %60 : vector<8x1024xf32> to vector<1x8x1024xf32>
    tpu.vector_store %arg8[%c0_29, %c0_30, %c0_31], %63 {strides = array<i32>} : memref<1x8x1024xf32, #tpu.memory_space<vmem>>, vector<1x8x1024xf32>,
    return
  }
  func.func @transform_0(%arg0: i32, %arg1: i32) -> (i32, i32, i32) {
    %c0_i32 = arith.constant 0 : i32
    %c0_i32_0 = arith.constant 0 : i32
    return %arg0, %arg1, %c0_i32 : i32, i32, i32
  }
  func.func @transform_1(%arg0: i32, %arg1: i32) -> (i32, i32, i32) {
    %c0_i32 = arith.constant 0 : i32
    %c0_i32_0 = arith.constant 0 : i32
    %c0_i32_1 = arith.constant 0 : i32
    return %arg0, %c0_i32, %c0_i32_0 : i32, i32, i32
  }
  func.func @transform_2(%arg0: i32, %arg1: i32) -> (i32, i32) {
    %c0_i32 = arith.constant 0 : i32
    %c0_i32_0 = arith.constant 0 : i32
    %c0_i32_1 = arith.constant 0 : i32
    return %c0_i32, %c0_i32_0 : i32, i32
  }
  func.func @transform_3(%arg0: i32, %arg1: i32) -> (i32, i32) {
    %c0_i32 = arith.constant 0 : i32
    %c0_i32_0 = arith.constant 0 : i32
    %c0_i32_1 = arith.constant 0 : i32
    return %c0_i32, %c0_i32_0 : i32, i32
  }
  func.func @transform_4(%arg0: i32, %arg1: i32) -> (i32, i32) {
    %c0_i32 = arith.constant 0 : i32
    %c0_i32_0 = arith.constant 0 : i32
    %c0_i32_1 = arith.constant 0 : i32
    return %c0_i32, %c0_i32_0 : i32, i32
  }
  func.func @transform_5(%arg0: i32, %arg1: i32) -> (i32, i32) {
    %c0_i32 = arith.constant 0 : i32
    %c0_i32_0 = arith.constant 0 : i32
    %c0_i32_1 = arith.constant 0 : i32
    return %c0_i32, %c0_i32_0 : i32, i32
  }
  func.func @transform_6(%arg0: i32, %arg1: i32) -> (i32, i32, i32) {
    %c0_i32 = arith.constant 0 : i32
    %c0_i32_0 = arith.constant 0 : i32
    return %arg0, %arg1, %c0_i32 : i32, i32, i32
  }
}

</mosaic_0001>

<llo_original>
// kernel: tpu_custom_call.1
$region0: #{tpu_custom_call.1}
  #allocation0 [shape = 'u32[]', space=smem, size = 0x4, offset = 0x4, fixed_abs, tag = 'smem constant byte address 0x4 - core index']
  #allocation1 [shape = 'u32[144,128]{1,0:T(1,128)}', space=vmem, size = 0x12000, scoped, tag = 'internal scratch']
  %s0 = inlined_call_operand.hbm [shape: f32[2,8,32], index: 0, kind: input, shape index: {}]
  %s1 = inlined_call_operand.hbm [shape: f32[2,32,256], index: 1, kind: input, shape index: {}]
  %s2 = inlined_call_operand.vmem [shape: f32[32,32], index: 2, kind: input, shape index: {}]
  %s3 = inlined_call_operand.hbm [shape: f32[32,32], index: 3, kind: input, shape index: {}]
  %s4 = inlined_call_operand.vmem [shape: f32[1,32], index: 4, kind: input, shape index: {}]
  %s5 = inlined_call_operand.vmem [shape: f32[32,1], index: 5, kind: input, shape index: {}]
  %s6 = inlined_call_operand.hbm [shape: f32[2,8,1024], index: 6, kind: output, shape index: {}]
  %s7 = sld [smem:[#allocation0]]
  $region69: #{tpu_custom_call.1} parent=0
    _
  %s9 = ssub.s32 1, %s7
  %s10 = scalar_select 0, %s9, %s7
  $region1: #{tpu_custom_call.1} parent=0
    #allocation2 [shape = 'u8[8192]{0}', space=vmem, size = 0x2000, scoped, tag = 'input window, operand 0']
    #allocation3 [shape = 's32[2]{0}', space=sflag, size = 0x8, scoped, tag = 'scoped memory for tpu_custom_call.1']
    #allocation4 [shape = 's32[2]{0}', space=sflag, size = 0x8, scoped, tag = 'scoped memory for tpu_custom_call.1']
    #allocation5 [shape = 'u8[65536]{0}', space=vmem, size = 0x10000, scoped, tag = 'input window, operand 1']
    #allocation6 [shape = 's32[2]{0}', space=sflag, size = 0x8, scoped, tag = 'scoped memory for tpu_custom_call.1']
    #allocation7 [shape = 'u8[16384]{0}', space=vmem, size = 0x4000, scoped, tag = 'input window, operand 3, single buffered']
    #allocation8 [shape = 'u8[65536]{0}', space=vmem, size = 0x10000, scoped, tag = 'output window, operand 0']
    %11 = vsyncpa [#allocation3], 0
    %s12 = scalar_lea.sflag [#allocation3], 1
    %13 = vsyncpa %s12, 0
    %14 = vsyncpa [#allocation6], 0
    %s15 = scalar_lea.sflag [#allocation6], 1
    %16 = vsyncpa %s15, 0
    %17 = vsyncpa [#allocation4], 0
    %s18 = scalar_lea.sflag [#allocation4], 1
    %19 = vsyncpa %s18, 0
    loop: start=0, step=1, limit=4
    $region2: #{tpu_custom_call.1} parent=1 // loop_pre_header
      _
    $region3: #{tpu_custom_call.1} parent=1 // loop_header
      %s21 = sphi 0, %s25
      %p22 = scmp.ge.s32.totalorder %s21, 4
      %s28 = sphi 0, %s40
      %s29 = sphi 0, %s36
      %s30 = sphi 0, %s28
      %s31 = sphi 0, %s29
      %s32 = sphi 0, %s30
      %s33 = sphi 0, %s31
      %s45 = sphi 0, %s47
      %s48 = sphi 0, %s45
      %s49 = sphi 0, %s48
      %s65 = sphi 0, %s49
      %s71 = sphi 0, %s73
      %s74 = sphi 0, %s71
      %s75 = sphi 0, %s74
      %s91 = sphi 0, %s75
      %s95 = sphi 0, %s95
      %s97 = sphi 0, %s95
      %s98 = sphi 0, %s97
      %s112 = sphi 0, %s98
      %s116 = sphi 0, %s116
      %s118 = sphi 0, %s116
      %s119 = sphi 0, %s118
      %s133 = sphi 0, %s119
      %s137 = sphi 0, %s137
      %s139 = sphi 0, %s137
      %s140 = sphi 0, %s139
      %s154 = sphi 0, %s140
      %s158 = sphi 0, %s158
      %s160 = sphi 0, %s158
      %s161 = sphi 0, %s160
      %s175 = sphi 0, %s161
      %s183 = sphi 0, %s185
      %s186 = sphi 0, %s183
      %s187 = sphi 0, %s186
      %s203 = sphi 0, %s187
    $region4: #{tpu_custom_call.1} parent=1 // loop_header_branch
      %24 = sbr.rel (%p22) target = $region8
    $region5: #{tpu_custom_call.1} parent=1 // loop_body
      %s26 = ssub.s32 %s21, 1
      %s27 = ssub.s32 %s21, 2
      %s34 = sadd.s32 1, %s29
      %p35 = scmp.ge.s32.totalorder %s34, 1
      %s36 = scalar_select %p35, 0, %s34
      %s37 = sadd.s32 1, %s28
      %s38 = scalar_select %p35, %s37, %s28
      %p39 = scmp.ge.s32.totalorder %s38, 2
      %s40 = scalar_select %p39, 0, %s38
      %s41 = ssub.s32 %s28, %s40
      %s42 = ssub.s32 %s29, %s36
      %s43 = sor.u32 %s41, %s42
      %p44 = scmp.eq.s32.totalorder %s43, 0
      %s46 = sadd.s32 %s45, 1
      %s47 = scalar_select %p44, %s45, %s46
      %p50 = pneg %p44
      %p51 = scmp.eq.s32.totalorder %s21, 1
      %p52 = por %p50, %p51
      %p53 = scmp.ne.s32.totalorder %s45, %s48
      %p54 = scmp.eq.s32.totalorder %s21, 0
      %p55 = por %p53, %p54
      %p56 = scmp.ne.s32.totalorder %s45, %s48
      %p57 = scmp.eq.s32.totalorder %s26, 1
      %p58 = por %p56, %p57
      %p59 = scmp.ne.s32.totalorder %s48, %s49
      %p60 = scmp.eq.s32.totalorder %s26, 0
      %p61 = por %p59, %p60
      %p62 = scmp.ne.s32.totalorder %s48, %s49
      %p63 = scmp.eq.s32.totalorder %s27, 1
      %p64 = por %p62, %p63
      %p66 = scmp.ne.s32.totalorder %s49, %s65
      %p67 = scmp.eq.s32.totalorder %s27, 0
      %p68 = por %p66, %p67
      %s69 = ssub.s32 %s28, %s40
      %p70 = scmp.eq.s32.totalorder %s69, 0
      %s72 = sadd.s32 %s71, 1
      %s73 = scalar_select %p70, %s71, %s72
      %p76 = pneg %p70
      %p77 = scmp.eq.s32.totalorder %s21, 1
      %p78 = por %p76, %p77
      %p79 = scmp.ne.s32.totalorder %s71, %s74
      %p80 = scmp.eq.s32.totalorder %s21, 0
      %p81 = por %p79, %p80
      %p82 = scmp.ne.s32.totalorder %s71, %s74
      %p83 = scmp.eq.s32.totalorder %s26, 1
      %p84 = por %p82, %p83
      %p85 = scmp.ne.s32.totalorder %s74, %s75
      %p86 = scmp.eq.s32.totalorder %s26, 0
      %p87 = por %p85, %p86
      %p88 = scmp.ne.s32.totalorder %s74, %s75
      %p89 = scmp.eq.s32.totalorder %s27, 1
      %p90 = por %p88, %p89
      %p92 = scmp.ne.s32.totalorder %s75, %s91
      %p93 = scmp.eq.s32.totalorder %s27, 0
      %p94 = por %p92, %p93
      %s96 = sadd.s32 %s95, 1
      %p99 = scmp.eq.s32.totalorder %s21, 1
      %p100 = scmp.ne.s32.totalorder %s95, %s97
      %p101 = scmp.eq.s32.totalorder %s21, 0
      %p102 = por %p100, %p101
      %p103 = scmp.ne.s32.totalorder %s95, %s97
      %p104 = scmp.eq.s32.totalorder %s26, 1
      %p105 = por %p103, %p104
      %p106 = scmp.ne.s32.totalorder %s97, %s98
      %p107 = scmp.eq.s32.totalorder %s26, 0
      %p108 = por %p106, %p107
      %p109 = scmp.ne.s32.totalorder %s97, %s98
      %p110 = scmp.eq.s32.totalorder %s27, 1
      %p111 = por %p109, %p110
      %p113 = scmp.ne.s32.totalorder %s98, %s112
      %p114 = scmp.eq.s32.totalorder %s27, 0
      %p115 = por %p113, %p114
      %s117 = sadd.s32 %s116, 1
      %p120 = scmp.eq.s32.totalorder %s21, 1
      %p121 = scmp.ne.s32.totalorder %s116, %s118
      %p122 = scmp.eq.s32.totalorder %s21, 0
      %p123 = por %p121, %p122
      %p124 = scmp.ne.s32.totalorder %s116, %s118
      %p125 = scmp.eq.s32.totalorder %s26, 1
      %p126 = por %p124, %p125
      %p127 = scmp.ne.s32.totalorder %s118, %s119
      %p128 = scmp.eq.s32.totalorder %s26, 0
      %p129 = por %p127, %p128
      %p130 = scmp.ne.s32.totalorder %s118, %s119
      %p131 = scmp.eq.s32.totalorder %s27, 1
      %p132 = por %p130, %p131
      %p134 = scmp.ne.s32.totalorder %s119, %s133
      %p135 = scmp.eq.s32.totalorder %s27, 0
      %p136 = por %p134, %p135
      %s138 = sadd.s32 %s137, 1
      %p141 = scmp.eq.s32.totalorder %s21, 1
      %p142 = scmp.ne.s32.totalorder %s137, %s139
      %p143 = scmp.eq.s32.totalorder %s21, 0
      %p144 = por %p142, %p143
      %p145 = scmp.ne.s32.totalorder %s137, %s139
      %p146 = scmp.eq.s32.totalorder %s26, 1
      %p147 = por %p145, %p146
      %p148 = scmp.ne.s32.totalorder %s139, %s140
      %p149 = scmp.eq.s32.totalorder %s26, 0
      %p150 = por %p148, %p149
      %p151 = scmp.ne.s32.totalorder %s139, %s140
      %p152 = scmp.eq.s32.totalorder %s27, 1
      %p153 = por %p151, %p152
      %p155 = scmp.ne.s32.totalorder %s140, %s154
      %p156 = scmp.eq.s32.totalorder %s27, 0
      %p157 = por %p155, %p156
      %s159 = sadd.s32 %s158, 1
      %p162 = scmp.eq.s32.totalorder %s21, 1
      %p163 = scmp.ne.s32.totalorder %s158, %s160
      %p164 = scmp.eq.s32.totalorder %s21, 0
      %p165 = por %p163, %p164
      %p166 = scmp.ne.s32.totalorder %s158, %s160
      %p167 = scmp.eq.s32.totalorder %s26, 1
      %p168 = por %p166, %p167
      %p169 = scmp.ne.s32.totalorder %s160, %s161
      %p170 = scmp.eq.s32.totalorder %s26, 0
      %p171 = por %p169, %p170
      %p172 = scmp.ne.s32.totalorder %s160, %s161
      %p173 = scmp.eq.s32.totalorder %s27, 1
      %p174 = por %p172, %p173
      %p176 = scmp.ne.s32.totalorder %s161, %s175
      %p177 = scmp.eq.s32.totalorder %s27, 0
      %p178 = por %p176, %p177
      %s179 = ssub.s32 %s28, %s40
      %s180 = ssub.s32 %s29, %s36
      %s181 = sor.u32 %s179, %s180
      %p182 = scmp.eq.s32.totalorder %s181, 0
      %s184 = sadd.s32 %s183, 1
      %s185 = scalar_select %p182, %s183, %s184
      %p188 = pneg %p182
      %p189 = scmp.eq.s32.totalorder %s21, 1
      %p190 = por %p188, %p189
      %p191 = scmp.ne.s32.totalorder %s183, %s186
      %p192 = scmp.eq.s32.totalorder %s21, 0
      %p193 = por %p191, %p192
      %p194 = scmp.ne.s32.totalorder %s183, %s186
      %p195 = scmp.eq.s32.totalorder %s26, 1
      %p196 = por %p194, %p195
      %p197 = scmp.ne.s32.totalorder %s186, %s187
      %p198 = scmp.eq.s32.totalorder %s26, 0
      %p199 = por %p197, %p198
      %p200 = scmp.ne.s32.totalorder %s186, %s187
      %p201 = scmp.eq.s32.totalorder %s27, 1
      %p202 = por %p200, %p201
      %p204 = scmp.ne.s32.totalorder %s187, %s203
      %p205 = scmp.eq.s32.totalorder %s27, 0
      %p206 = por %p204, %p205
      %p207 = scmp.le.s32.totalorder 1, %s21
      %p208 = scmp.lt.s32.totalorder %s21, 3
      %p209 = pnand %p207, %p208
      %p210 = pneg %p209
      // Predicated region
      $region9: #{tpu_custom_call.1} parent=5 // pred_check
        _
      $region10: #{tpu_custom_call.1} parent=5 // pred_check_branch
        %212 = sbr.rel (%p209) target = $region12
      $region11: #{tpu_custom_call.1} parent=5 // pred_region
        %s213 = ssub.s32 %s21, 1
        // Predicated region
        $region13: #{tpu_custom_call.1} parent=11 // pred_check
          %p214 = pneg %p108
        $region14: #{tpu_custom_call.1} parent=11 // pred_check_branch
          %216 = sbr.rel (%p214) target = $region16
        $region15: #{tpu_custom_call.1} parent=11 // pred_region
          _
        $region16: #{tpu_custom_call.1} parent=11 // pred_fallthru
          _
        // Predicated region
        $region17: #{tpu_custom_call.1} parent=11 // pred_check
          %p217 = pneg %p129
        $region18: #{tpu_custom_call.1} parent=11 // pred_check_branch
          %219 = sbr.rel (%p217) target = $region20
        $region19: #{tpu_custom_call.1} parent=11 // pred_region
          %s221 = ssub.s32 512, 512
          %222 = vsyncadd [#allocation6], %s221
          %s223 = sshll.u32 [#allocation7], 4
          %s224 = int_to_ptr.vmem [resolvable:$true] %s223
          %229 = dma.hbm_to_vmem [thread:$0]  %s3, 512, %s224, [#allocation6], 128, 128, 8
        $region20: #{tpu_custom_call.1} parent=11 // pred_fallthru
          _
        // Predicated region
        $region21: #{tpu_custom_call.1} parent=11 // pred_check
          %p230 = pneg %p150
        $region22: #{tpu_custom_call.1} parent=11 // pred_check_branch
          %232 = sbr.rel (%p230) target = $region24
        $region23: #{tpu_custom_call.1} parent=11 // pred_region
          _
        $region24: #{tpu_custom_call.1} parent=11 // pred_fallthru
          _
        // Predicated region
        $region25: #{tpu_custom_call.1} parent=11 // pred_check
          %p233 = pneg %p171
        $region26: #{tpu_custom_call.1} parent=11 // pred_check_branch
          %235 = sbr.rel (%p233) target = $region28
        $region27: #{tpu_custom_call.1} parent=11 // pred_region
          _
        $region28: #{tpu_custom_call.1} parent=11 // pred_fallthru
          _
      $region12: #{tpu_custom_call.1} parent=5 // pred_fallthru
        _
      %p236 = scmp.lt.s32.totalorder %s21, 2
      // Predicated region
      $region29: #{tpu_custom_call.1} parent=5 // pred_check
        %p237 = pneg %p236
      $region30: #{tpu_custom_call.1} parent=5 // pred_check_branch
        %239 = sbr.rel (%p237) target = $region32
      $region31: #{tpu_custom_call.1} parent=5 // pred_region
        // Predicated region
        $region33: #{tpu_custom_call.1} parent=31 // pred_check
          %p240 = pneg %p55
        $region34: #{tpu_custom_call.1} parent=31 // pred_check_branch
          %242 = sbr.rel (%p240) target = $region36
        $region35: #{tpu_custom_call.1} parent=31 // pred_region
          %s243 = sand.u32 %s45, 1
          %s244 = scalar_lea.sflag [#allocation3], %s243
          %s245 = sand.u32 %s45, 1
          %s246 = smul.addr %s245, 8
          %s247 = scalar_lea.vmem [#allocation2], %s246
          %s249 = ssub.s32 128, 128
          %250 = vsyncadd %s244, %s249
          %s251 = sadd.s32 %s29, %s28
          %s252 = smul.addr %s251, 128
          %s253 = scalar_lea.hbm %s0, %s252
          %s255 = sshll.u32 %s247, 4
          %s256 = int_to_ptr.vmem [resolvable:$true] %s255
          %258 = dma.hbm_to_vmem [thread:$0]  %s253, 128, %s256, %s244
        $region36: #{tpu_custom_call.1} parent=31 // pred_fallthru
          _
        // Predicated region
        $region37: #{tpu_custom_call.1} parent=31 // pred_check
          %p259 = pneg %p81
        $region38: #{tpu_custom_call.1} parent=31 // pred_check_branch
          %261 = sbr.rel (%p259) target = $region40
        $region39: #{tpu_custom_call.1} parent=31 // pred_region
          %s262 = sand.u32 %s21, 1
          %s263 = scalar_lea.sflag [#allocation6], %s262
          %s264 = sand.u32 %s71, 1
          %s265 = smul.addr %s264, 64
          %s266 = scalar_lea.vmem [#allocation5], %s265
          %s268 = ssub.s32 1024, 1024
          %269 = vsyncadd %s263, %s268
          %s270 = smul.addr %s28, 8
          %s271 = smul.addr %s270, 128
          %s272 = scalar_lea.hbm %s1, %s271
          %s273 = sshll.u32 %s266, 4
          %s274 = int_to_ptr.vmem [resolvable:$true] %s273
          %279 = dma.hbm_to_vmem [thread:$0]  %s272, 1024, %s274, %s263, 256, 256, 16
        $region40: #{tpu_custom_call.1} parent=31 // pred_fallthru
          _
      $region32: #{tpu_custom_call.1} parent=5 // pred_fallthru
        _
      %p280 = scmp.le.s32.totalorder 1, %s21
      %p281 = scmp.lt.s32.totalorder %s21, 3
      %p282 = pnand %p280, %p281
      %p283 = pneg %p282
      // Predicated region
      $region41: #{tpu_custom_call.1} parent=5 // pred_check
        _
      $region42: #{tpu_custom_call.1} parent=5 // pred_check_branch
        %285 = sbr.rel (%p282) target = $region44
      $region43: #{tpu_custom_call.1} parent=5 // pred_region
        %s286 = ssub.s32 %s21, 1
        %s287 = sand.u32 %s48, 1
        %s288 = scalar_lea.sflag [#allocation3], %s287
        %s289 = sand.u32 %s48, 1
        %s290 = smul.addr %s289, 8
        %s291 = scalar_lea.vmem [#allocation2], %s290
        // Predicated region
        $region45: #{tpu_custom_call.1} parent=43 // pred_check
          %p292 = pneg %p61
        $region46: #{tpu_custom_call.1} parent=43 // pred_check_branch
          %294 = sbr.rel (%p292) target = $region48
        $region47: #{tpu_custom_call.1} parent=43 // pred_region
          %295 = dma.done %s288, 128
        $region48: #{tpu_custom_call.1} parent=43 // pred_fallthru
          _
        %s296 = sand.u32 %s26, 1
        %s297 = scalar_lea.sflag [#allocation6], %s296
        %s298 = sand.u32 %s74, 1
        %s299 = smul.addr %s298, 64
        %s300 = scalar_lea.vmem [#allocation5], %s299
        // Predicated region
        $region49: #{tpu_custom_call.1} parent=43 // pred_check
          %p301 = pneg %p87
        $region50: #{tpu_custom_call.1} parent=43 // pred_check_branch
          %303 = sbr.rel (%p301) target = $region52
        $region51: #{tpu_custom_call.1} parent=43 // pred_region
          %304 = dma.done %s297, 1024
        $region52: #{tpu_custom_call.1} parent=43 // pred_fallthru
          _
        // Predicated region
        $region53: #{tpu_custom_call.1} parent=43 // pred_check
          %p305 = pneg %p129
        $region54: #{tpu_custom_call.1} parent=43 // pred_check_branch
          %307 = sbr.rel (%p305) target = $region56
        $region55: #{tpu_custom_call.1} parent=43 // pred_region
          %308 = dma.done [#allocation6], 512
        $region56: #{tpu_custom_call.1} parent=43 // pred_fallthru
          _
        %s309 = sand.u32 %s48, 1
        %s310 = scalar_lea.sflag [#allocation3], %s309
        %s311 = sand.u32 %s48, 1
        %s312 = smul.addr %s311, 8
        %s313 = scalar_lea.vmem [#allocation2], %s312
        %p314 = pneg %p61
        %p315 = pneg %p58
        %s316 = sand.u32 %s26, 1
        %s317 = scalar_lea.sflag [#allocation6], %s316
        %s318 = sand.u32 %s74, 1
        %s319 = smul.addr %s318, 64
        %s320 = scalar_lea.vmem [#allocation5], %s319
        %p321 = pneg %p87
        %p322 = pneg %p84
        %p323 = pneg %p108
        %p324 = pneg %p105
        %p325 = pneg %p129
        %p326 = pneg %p126
        %p327 = pneg %p150
        %p328 = pneg %p147
        %p329 = pneg %p171
        %p330 = pneg %p168
        %p331 = pneg %p199
        %p332 = pneg %p196
        %s333 = sand.u32 %s186, 1
        %s334 = scalar_lea.sflag [#allocation4], %s333
        %s335 = sand.u32 %s186, 1
        %s336 = smul.addr %s335, 64
        %s337 = scalar_lea.vmem [#allocation8], %s336
        %v338 = vld [vmem:[%s291] sm:$0xff]
        %v339 = vld [vmem:[%s300] sm:$0xff]
        %v340 = vld [vmem:[%s300 + $0x8] sm:$0xff]
        %v341 = vld [vmem:[%s300 + $0x10] sm:$0xff]
        %v342 = vld [vmem:[%s300 + $0x18] sm:$0xff]
        %v343 = vld [vmem:[%s300 + $0x20] sm:$0xff]
        %v344 = vld [vmem:[%s300 + $0x28] sm:$0xff]
        %v345 = vld [vmem:[%s300 + $0x30] sm:$0xff]
        %v346 = vld [vmem:[%s300 + $0x38] sm:$0xff]
        %v347 = vld [vmem:[%s2] sm:$0xff]
        %v348 = vld [vmem:[%s2 + $0x8] sm:$0xff]
        %v349 = vld [vmem:[%s2 + $0x10] sm:$0xff]
        %v350 = vld [vmem:[%s2 + $0x18] sm:$0xff]
        %v351 = vld [vmem:[%s4] sm:$0x1]
        %v353 = vlaneseq
        %v354 = vshrl.u32 %v353, 7
        %v355 = vsub.s32 0, %v354
        %v356 = vrot.slane %v351, %v355
        %vm358 = vcmask 261120
        %v360 = vsel %vm358, %v338, 0
        %362 = vmatprep.subr.mxu0 0.0
        %363 = vmatpush1.msra.mxu0 %v347
        %364 = vmatprep.subr.mxu0 0.0
        %365 = vmatpush1.msra.mxu0 %v348
        %366 = vmatprep.subr.mxu0 0.0
        %367 = vmatpush1.msra.mxu0 %v349
        %368 = vmatprep.subr.mxu0 0.0
        %369 = vmatpush1.msra.mxu0 %v350
        %370 = vmatprep.subr.mxu0 0.0
        %371 = vmatpush1.msra.mxu0 0.0
        %372 = vmatprep.subr.mxu0 0.0
        %373 = vmatpush1.msra.mxu0 0.0
        %374 = vmatprep.subr.mxu0 0.0
        %375 = vmatpush1.msra.mxu0 0.0
        %376 = vmatprep.subr.mxu0 0.0
        %377 = vmatpush1.msra.mxu0 0.0
        %378 = vmatprep.subr.mxu0 0.0
        %379 = vmatpush1.msra.mxu0 0.0
        %380 = vmatprep.subr.mxu0 0.0
        %381 = vmatpush1.msra.mxu0 0.0
        %382 = vmatprep.subr.mxu0 0.0
        %383 = vmatpush1.msra.mxu0 0.0
        %384 = vmatprep.subr.mxu0 0.0
        %385 = vmatpush1.msra.mxu0 0.0
        %386 = vmatprep.subr.mxu0 0.0
        %387 = vmatpush1.msra.mxu0 0.0
        %388 = vmatprep.subr.mxu0 0.0
        %389 = vmatpush1.msra.mxu0 0.0
        %390 = vmatprep.subr.mxu0 0.0
        %391 = vmatpush1.msra.mxu0 0.0
        %392 = vmatprep.subr.mxu0 0.0
        %393 = vmatpush1.msra.mxu0 0.0
        %394 = vmatprep.subr.mxu0 0.0
        %395 = vmatpush1.msra.mxu0 0.0
        %396 = vmatprep.subr.mxu0 0.0
        %397 = vmatpush1.msra.mxu0 0.0
        %398 = vmatprep.subr.mxu0 0.0
        %399 = vmatpush1.msra.mxu0 0.0
        %400 = vmatprep.subr.mxu0 0.0
        %401 = vmatpush1.msra.mxu0 0.0
        %402 = vmatprep.subr.mxu0 0.0
        %403 = vmatpush1.msra.mxu0 0.0
        %404 = vmatprep.subr.mxu0 0.0
        %405 = vmatpush1.msra.mxu0 0.0
        %406 = vmatprep.subr.mxu0 0.0
        %407 = vmatpush1.msra.mxu0 0.0
        %408 = vmatprep.subr.mxu0 0.0
        %409 = vmatpush1.msra.mxu0 0.0
        %410 = vmatprep.subr.mxu0 0.0
        %411 = vmatpush1.msra.mxu0 0.0
        %412 = vmatprep.subr.mxu0 0.0
        %413 = vmatpush1.msra.mxu0 0.0
        %414 = vmatprep.subr.mxu0 0.0
        %415 = vmatpush1.msra.mxu0 0.0
        %416 = vmatprep.subr.mxu0 0.0
        %417 = vmatpush1.msra.mxu0 0.0
        %418 = vmatprep.subr.mxu0 0.0
        %419 = vmatpush1.msra.mxu0 0.0
        %420 = vmatprep.subr.mxu0 0.0
        %421 = vmatpush1.msra.mxu0 0.0
        %422 = vmatprep.subr.mxu0 0.0
        %423 = vmatpush1.msra.mxu0 0.0
        %424 = vmatprep.subr.mxu0 0.0
        %425 = vmatpush1.msra.mxu0 0.0
        %426 = vmatprep.mubr.f32.mxu0 0.0
        %427 = vmatmul.mubr.f32.gmra.mrb[0].mxu0 %v360
        %v428 = vpop.f32.mrb[0].mxu0
        %v429 = vadd.f32 %v356, %v428
        %v430 = vpop.f32.mrb[0].mxu0
        %431 = vdwg.mxu0
        %v432 = vmul.f32 %v429, 0.35355338
        %v433 = vld [vmem:[#allocation7] sm:$0xff]
        %v434 = vld [vmem:[#allocation7 + $0x8] sm:$0xff]
        %v435 = vld [vmem:[#allocation7 + $0x10] sm:$0xff]
        %v436 = vld [vmem:[#allocation7 + $0x18] sm:$0xff]
        %v437 = vld [vmem:[%s5] sm:$0xff]
        %v438 = vld [vmem:[%s5 + $0x8] sm:$0xff]
        %v439 = vld [vmem:[%s5 + $0x10] sm:$0xff]
        %v440 = vld [vmem:[%s5 + $0x18] sm:$0xff]
        %442 = vset.pattern.permute.xlu0 0
        %443 = vperm.xlu0 %442, %v437
        %v444 = vpop.permute.xlu0 %443
        %447 = vset.pattern.permute.xlu0 0
        %448 = vperm.xlu0 %447, %v438
        %v449 = vpop.permute.xlu0 %448
        %452 = vset.pattern.permute.xlu0 0
        %453 = vperm.xlu0 %452, %v439
        %v454 = vpop.permute.xlu0 %453
        %457 = vset.pattern.permute.xlu0 0
        %458 = vperm.xlu0 %457, %v440
        %v459 = vpop.permute.xlu0 %458
        %v462 = vsel %vm358, %v433, 0
        %v465 = vsel %vm358, %v434, 0
        %v468 = vsel %vm358, %v435, 0
        %v471 = vsel %vm358, %v436, 0
        %473 = vmatprep.subr.mxu0 %v340
        %474 = vmatpush1.msra.mxu0 %v339
        %475 = vmatprep.subr.mxu0 %v342
        %476 = vmatpush1.msra.mxu0 %v341
        %477 = vmatprep.subr.mxu0 %v344
        %478 = vmatpush1.msra.mxu0 %v343
        %479 = vmatprep.subr.mxu0 %v346
        %480 = vmatpush1.msra.mxu0 %v345
        %481 = vmatprep.subr.mxu0 0.0
        %482 = vmatpush1.msra.mxu0 0.0
        %483 = vmatprep.subr.mxu0 0.0
        %484 = vmatpush1.msra.mxu0 0.0
        %485 = vmatprep.subr.mxu0 0.0
        %486 = vmatpush1.msra.mxu0 0.0
        %487 = vmatprep.subr.mxu0 0.0
        %488 = vmatpush1.msra.mxu0 0.0
        %489 = vmatprep.subr.mxu0 0.0
        %490 = vmatpush1.msra.mxu0 0.0
        %491 = vmatprep.subr.mxu0 0.0
        %492 = vmatpush1.msra.mxu0 0.0
        %493 = vmatprep.subr.mxu0 0.0
        %494 = vmatpush1.msra.mxu0 0.0
        %495 = vmatprep.subr.mxu0 0.0
        %496 = vmatpush1.msra.mxu0 0.0
        %497 = vmatprep.subr.mxu0 0.0
        %498 = vmatpush1.msra.mxu0 0.0
        %499 = vmatprep.subr.mxu0 0.0
        %500 = vmatpush1.msra.mxu0 0.0
        %501 = vmatprep.subr.mxu0 0.0
        %502 = vmatpush1.msra.mxu0 0.0
        %503 = vmatprep.subr.mxu0 0.0
        %504 = vmatpush1.msra.mxu0 0.0
        %505 = vmatprep.subr.mxu0 0.0
        %506 = vmatpush1.msra.mxu0 0.0
        %507 = vmatprep.subr.mxu0 0.0
        %508 = vmatpush1.msra.mxu0 0.0
        %509 = vmatprep.subr.mxu0 0.0
        %510 = vmatpush1.msra.mxu0 0.0
        %511 = vmatprep.subr.mxu0 0.0
        %512 = vmatpush1.msra.mxu0 0.0
        %513 = vmatprep.subr.mxu0 0.0
        %514 = vmatpush1.msra.mxu0 0.0
        %515 = vmatprep.subr.mxu0 0.0
        %516 = vmatpush1.msra.mxu0 0.0
        %517 = vmatprep.subr.mxu0 0.0
        %518 = vmatpush1.msra.mxu0 0.0
        %519 = vmatprep.subr.mxu0 0.0
        %520 = vmatpush1.msra.mxu0 0.0
        %521 = vmatprep.subr.mxu0 0.0
        %522 = vmatpush1.msra.mxu0 0.0
        %523 = vmatprep.subr.mxu0 0.0
        %524 = vmatpush1.msra.mxu0 0.0
        %525 = vmatprep.subr.mxu0 0.0
        %526 = vmatpush1.msra.mxu0 0.0
        %527 = vmatprep.subr.mxu0 0.0
        %528 = vmatpush1.msra.mxu0 0.0
        %529 = vmatprep.subr.mxu0 0.0
        %530 = vmatpush1.msra.mxu0 0.0
        %531 = vmatprep.subr.mxu0 0.0
        %532 = vmatpush1.msra.mxu0 0.0
        %533 = vmatprep.subr.mxu0 0.0
        %534 = vmatpush1.msra.mxu0 0.0
        %535 = vmatprep.subr.mxu0 0.0
        %536 = vmatpush1.msra.mxu0 0.0
        %537 = vmatprep.mubr.f32.mxu0 0.0
        %538 = vmatmul.mubr.f32.gmra.mrb[0].mxu0 %v462
        %v539 = vpop.f32.mrb[0].mxu0
        %v540 = vadd.f32 %v444, %v539
        %v541 = vpop.f32.mrb[0].mxu0
        %v542 = vadd.f32 %v444, %v541
        %543 = vmatprep.mubr.f32.mxu0 0.0
        %544 = vmatmul.mubr.f32.gmra.mrb[0].mxu0 %v465
        %v545 = vpop.f32.mrb[0].mxu0
        %v546 = vadd.f32 %v449, %v545
        %v547 = vpop.f32.mrb[0].mxu0
        %v548 = vadd.f32 %v449, %v547
        %549 = vmatprep.mubr.f32.mxu0 0.0
        %550 = vmatmul.mubr.f32.gmra.mrb[0].mxu0 %v468
        %v551 = vpop.f32.mrb[0].mxu0
        %v552 = vadd.f32 %v454, %v551
        %v553 = vpop.f32.mrb[0].mxu0
        %v554 = vadd.f32 %v454, %v553
        %555 = vmatprep.mubr.f32.mxu0 0.0
        %556 = vmatmul.mubr.f32.gmra.mrb[0].mxu0 %v471
        %v557 = vpop.f32.mrb[0].mxu0
        %v558 = vadd.f32 %v459, %v557
        %v559 = vpop.f32.mrb[0].mxu0
        %v560 = vadd.f32 %v459, %v559
        %561 = vdwg.mxu0
        %v562 = vlaneseq
        %v563 = vand.u32 %v562, 127
        %vm564 = vcmp.ge.s32.totalorder %v563, 0
        %vm565 = vcmp.lt.s32.totalorder %v563, 8
        %vm566 = vmand %vm564, %vm565
        %v567 = vsel %vm566, %v432, 0.0
        %v569 = vsel %vm358, %v567, 0
        %571 = vmatprep.subr.mxu0 %v542
        %572 = vmatpush1.msra.mxu0 %v540
        %573 = vmatprep.subr.mxu0 %v548
        %574 = vmatpush1.msra.mxu0 %v546
        %575 = vmatprep.subr.mxu0 %v554
        %576 = vmatpush1.msra.mxu0 %v552
        %577 = vmatprep.subr.mxu0 %v560
        %578 = vmatpush1.msra.mxu0 %v558
        %579 = vmatprep.subr.mxu0 0.0
        %580 = vmatpush1.msra.mxu0 0.0
        %581 = vmatprep.subr.mxu0 0.0
        %582 = vmatpush1.msra.mxu0 0.0
        %583 = vmatprep.subr.mxu0 0.0
        %584 = vmatpush1.msra.mxu0 0.0
        %585 = vmatprep.subr.mxu0 0.0
        %586 = vmatpush1.msra.mxu0 0.0
        %587 = vmatprep.subr.mxu0 0.0
        %588 = vmatpush1.msra.mxu0 0.0
        %589 = vmatprep.subr.mxu0 0.0
        %590 = vmatpush1.msra.mxu0 0.0
        %591 = vmatprep.subr.mxu0 0.0
        %592 = vmatpush1.msra.mxu0 0.0
        %593 = vmatprep.subr.mxu0 0.0
        %594 = vmatpush1.msra.mxu0 0.0
        %595 = vmatprep.subr.mxu0 0.0
        %596 = vmatpush1.msra.mxu0 0.0
        %597 = vmatprep.subr.mxu0 0.0
        %598 = vmatpush1.msra.mxu0 0.0
        %599 = vmatprep.subr.mxu0 0.0
        %600 = vmatpush1.msra.mxu0 0.0
        %601 = vmatprep.subr.mxu0 0.0
        %602 = vmatpush1.msra.mxu0 0.0
        %603 = vmatprep.subr.mxu0 0.0
        %604 = vmatpush1.msra.mxu0 0.0
        %605 = vmatprep.subr.mxu0 0.0
        %606 = vmatpush1.msra.mxu0 0.0
        %607 = vmatprep.subr.mxu0 0.0
        %608 = vmatpush1.msra.mxu0 0.0
        %609 = vmatprep.subr.mxu0 0.0
        %610 = vmatpush1.msra.mxu0 0.0
        %611 = vmatprep.subr.mxu0 0.0
        %612 = vmatpush1.msra.mxu0 0.0
        %613 = vmatprep.subr.mxu0 0.0
        %614 = vmatpush1.msra.mxu0 0.0
        %615 = vmatprep.subr.mxu0 0.0
        %616 = vmatpush1.msra.mxu0 0.0
        %617 = vmatprep.subr.mxu0 0.0
        %618 = vmatpush1.msra.mxu0 0.0
        %619 = vmatprep.subr.mxu0 0.0
        %620 = vmatpush1.msra.mxu0 0.0
        %621 = vmatprep.subr.mxu0 0.0
        %622 = vmatpush1.msra.mxu0 0.0
        %623 = vmatprep.subr.mxu0 0.0
        %624 = vmatpush1.msra.mxu0 0.0
        %625 = vmatprep.subr.mxu0 0.0
        %626 = vmatpush1.msra.mxu0 0.0
        %627 = vmatprep.subr.mxu0 0.0
        %628 = vmatpush1.msra.mxu0 0.0
        %629 = vmatprep.subr.mxu0 0.0
        %630 = vmatpush1.msra.mxu0 0.0
        %631 = vmatprep.subr.mxu0 0.0
        %632 = vmatpush1.msra.mxu0 0.0
        %633 = vmatprep.subr.mxu0 0.0
        %634 = vmatpush1.msra.mxu0 0.0
        %635 = vmatprep.mubr.f32.mxu0 0.0
        %636 = vmatmul.mubr.f32.gmra.mrb[0].mxu0 %v569
        %v637 = vpop.f32.mrb[0].mxu0
        %v638 = vadd.f32 0.0, %v637
        %v639 = vpop.f32.mrb[0].mxu0
        %v640 = vadd.f32 0.0, %v639
        %641 = vdwg.mxu0
        %vm642 = vcmp.ge.s32.totalorder %v563, 8
        %vm643 = vcmp.lt.s32.totalorder %v563, 16
        %vm644 = vmand %vm642, %vm643
        %v645 = vsel %vm644, %v432, 0.0
        %v647 = vsel %vm358, %v645, 0
        %649 = vmatprep.subr.mxu0 %v542
        %650 = vmatpush1.msra.mxu0 %v540
        %651 = vmatprep.subr.mxu0 %v548
        %652 = vmatpush1.msra.mxu0 %v546
        %653 = vmatprep.subr.mxu0 %v554
        %654 = vmatpush1.msra.mxu0 %v552
        %655 = vmatprep.subr.mxu0 %v560
        %656 = vmatpush1.msra.mxu0 %v558
        %657 = vmatprep.subr.mxu0 0.0
        %658 = vmatpush1.msra.mxu0 0.0
        %659 = vmatprep.subr.mxu0 0.0
        %660 = vmatpush1.msra.mxu0 0.0
        %661 = vmatprep.subr.mxu0 0.0
        %662 = vmatpush1.msra.mxu0 0.0
        %663 = vmatprep.subr.mxu0 0.0
        %664 = vmatpush1.msra.mxu0 0.0
        %665 = vmatprep.subr.mxu0 0.0
        %666 = vmatpush1.msra.mxu0 0.0
        %667 = vmatprep.subr.mxu0 0.0
        %668 = vmatpush1.msra.mxu0 0.0
        %669 = vmatprep.subr.mxu0 0.0
        %670 = vmatpush1.msra.mxu0 0.0
        %671 = vmatprep.subr.mxu0 0.0
        %672 = vmatpush1.msra.mxu0 0.0
        %673 = vmatprep.subr.mxu0 0.0
        %674 = vmatpush1.msra.mxu0 0.0
        %675 = vmatprep.subr.mxu0 0.0
        %676 = vmatpush1.msra.mxu0 0.0
        %677 = vmatprep.subr.mxu0 0.0
        %678 = vmatpush1.msra.mxu0 0.0
        %679 = vmatprep.subr.mxu0 0.0
        %680 = vmatpush1.msra.mxu0 0.0
        %681 = vmatprep.subr.mxu0 0.0
        %682 = vmatpush1.msra.mxu0 0.0
        %683 = vmatprep.subr.mxu0 0.0
        %684 = vmatpush1.msra.mxu0 0.0
        %685 = vmatprep.subr.mxu0 0.0
        %686 = vmatpush1.msra.mxu0 0.0
        %687 = vmatprep.subr.mxu0 0.0
        %688 = vmatpush1.msra.mxu0 0.0
        %689 = vmatprep.subr.mxu0 0.0
        %690 = vmatpush1.msra.mxu0 0.0
        %691 = vmatprep.subr.mxu0 0.0
        %692 = vmatpush1.msra.mxu0 0.0
        %693 = vmatprep.subr.mxu0 0.0
        %694 = vmatpush1.msra.mxu0 0.0
        %695 = vmatprep.subr.mxu0 0.0
        %696 = vmatpush1.msra.mxu0 0.0
        %697 = vmatprep.subr.mxu0 0.0
        %698 = vmatpush1.msra.mxu0 0.0
        %699 = vmatprep.subr.mxu0 0.0
        %700 = vmatpush1.msra.mxu0 0.0
        %701 = vmatprep.subr.mxu0 0.0
        %702 = vmatpush1.msra.mxu0 0.0
        %703 = vmatprep.subr.mxu0 0.0
        %704 = vmatpush1.msra.mxu0 0.0
        %705 = vmatprep.subr.mxu0 0.0
        %706 = vmatpush1.msra.mxu0 0.0
        %707 = vmatprep.subr.mxu0 0.0
        %708 = vmatpush1.msra.mxu0 0.0
        %709 = vmatprep.subr.mxu0 0.0
        %710 = vmatpush1.msra.mxu0 0.0
        %711 = vmatprep.subr.mxu0 0.0
        %712 = vmatpush1.msra.mxu0 0.0
        %713 = vmatprep.mubr.f32.mxu0 0.0
        %714 = vmatmul.mubr.f32.gmra.mrb[0].mxu0 %v647
        %v715 = vpop.f32.mrb[0].mxu0
        %v716 = vadd.f32 0.0, %v715
        %v717 = vpop.f32.mrb[0].mxu0
        %v718 = vadd.f32 0.0, %v717
        %719 = vdwg.mxu0
        %vm720 = vcmp.ge.s32.totalorder %v563, 16
        %vm721 = vcmp.lt.s32.totalorder %v563, 24
        %vm722 = vmand %vm720, %vm721
        %v723 = vsel %vm722, %v432, 0.0
        %v725 = vsel %vm358, %v723, 0
        %727 = vmatprep.subr.mxu0 %v542
        %728 = vmatpush1.msra.mxu0 %v540
        %729 = vmatprep.subr.mxu0 %v548
        %730 = vmatpush1.msra.mxu0 %v546
        %731 = vmatprep.subr.mxu0 %v554
        %732 = vmatpush1.msra.mxu0 %v552
        %733 = vmatprep.subr.mxu0 %v560
        %734 = vmatpush1.msra.mxu0 %v558
        %735 = vmatprep.subr.mxu0 0.0
        %736 = vmatpush1.msra.mxu0 0.0
        %737 = vmatprep.subr.mxu0 0.0
        %738 = vmatpush1.msra.mxu0 0.0
        %739 = vmatprep.subr.mxu0 0.0
        %740 = vmatpush1.msra.mxu0 0.0
        %741 = vmatprep.subr.mxu0 0.0
        %742 = vmatpush1.msra.mxu0 0.0
        %743 = vmatprep.subr.mxu0 0.0
        %744 = vmatpush1.msra.mxu0 0.0
        %745 = vmatprep.subr.mxu0 0.0
        %746 = vmatpush1.msra.mxu0 0.0
        %747 = vmatprep.subr.mxu0 0.0
        %748 = vmatpush1.msra.mxu0 0.0
        %749 = vmatprep.subr.mxu0 0.0
        %750 = vmatpush1.msra.mxu0 0.0
        %751 = vmatprep.subr.mxu0 0.0
        %752 = vmatpush1.msra.mxu0 0.0
        %753 = vmatprep.subr.mxu0 0.0
        %754 = vmatpush1.msra.mxu0 0.0
        %755 = vmatprep.subr.mxu0 0.0
        %756 = vmatpush1.msra.mxu0 0.0
        %757 = vmatprep.subr.mxu0 0.0
        %758 = vmatpush1.msra.mxu0 0.0
        %759 = vmatprep.subr.mxu0 0.0
        %760 = vmatpush1.msra.mxu0 0.0
        %761 = vmatprep.subr.mxu0 0.0
        %762 = vmatpush1.msra.mxu0 0.0
        %763 = vmatprep.subr.mxu0 0.0
        %764 = vmatpush1.msra.mxu0 0.0
        %765 = vmatprep.subr.mxu0 0.0
        %766 = vmatpush1.msra.mxu0 0.0
        %767 = vmatprep.subr.mxu0 0.0
        %768 = vmatpush1.msra.mxu0 0.0
        %769 = vmatprep.subr.mxu0 0.0
        %770 = vmatpush1.msra.mxu0 0.0
        %771 = vmatprep.subr.mxu0 0.0
        %772 = vmatpush1.msra.mxu0 0.0
        %773 = vmatprep.subr.mxu0 0.0
        %774 = vmatpush1.msra.mxu0 0.0
        %775 = vmatprep.subr.mxu0 0.0
        %776 = vmatpush1.msra.mxu0 0.0
        %777 = vmatprep.subr.mxu0 0.0
        %778 = vmatpush1.msra.mxu0 0.0
        %779 = vmatprep.subr.mxu0 0.0
        %780 = vmatpush1.msra.mxu0 0.0
        %781 = vmatprep.subr.mxu0 0.0
        %782 = vmatpush1.msra.mxu0 0.0
        %783 = vmatprep.subr.mxu0 0.0
        %784 = vmatpush1.msra.mxu0 0.0
        %785 = vmatprep.subr.mxu0 0.0
        %786 = vmatpush1.msra.mxu0 0.0
        %787 = vmatprep.subr.mxu0 0.0
        %788 = vmatpush1.msra.mxu0 0.0
        %789 = vmatprep.subr.mxu0 0.0
        %790 = vmatpush1.msra.mxu0 0.0
        %791 = vmatprep.mubr.f32.mxu0 0.0
        %792 = vmatmul.mubr.f32.gmra.mrb[0].mxu0 %v725
        %v793 = vpop.f32.mrb[0].mxu0
        %v794 = vadd.f32 0.0, %v793
        %v795 = vpop.f32.mrb[0].mxu0
        %v796 = vadd.f32 0.0, %v795
        %797 = vdwg.mxu0
        %vm798 = vcmp.ge.s32.totalorder %v563, 24
        %vm799 = vcmp.lt.s32.totalorder %v563, 32
        %vm800 = vmand %vm798, %vm799
        %v801 = vsel %vm800, %v432, 0.0
        %v803 = vsel %vm358, %v801, 0
        %805 = vmatprep.subr.mxu0 %v542
        %806 = vmatpush1.msra.mxu0 %v540
        %807 = vmatprep.subr.mxu0 %v548
        %808 = vmatpush1.msra.mxu0 %v546
        %809 = vmatprep.subr.mxu0 %v554
        %810 = vmatpush1.msra.mxu0 %v552
        %811 = vmatprep.subr.mxu0 %v560
        %812 = vmatpush1.msra.mxu0 %v558
        %813 = vmatprep.subr.mxu0 0.0
        %814 = vmatpush1.msra.mxu0 0.0
        %815 = vmatprep.subr.mxu0 0.0
        %816 = vmatpush1.msra.mxu0 0.0
        %817 = vmatprep.subr.mxu0 0.0
        %818 = vmatpush1.msra.mxu0 0.0
        %819 = vmatprep.subr.mxu0 0.0
        %820 = vmatpush1.msra.mxu0 0.0
        %821 = vmatprep.subr.mxu0 0.0
        %822 = vmatpush1.msra.mxu0 0.0
        %823 = vmatprep.subr.mxu0 0.0
        %824 = vmatpush1.msra.mxu0 0.0
        %825 = vmatprep.subr.mxu0 0.0
        %826 = vmatpush1.msra.mxu0 0.0
        %827 = vmatprep.subr.mxu0 0.0
        %828 = vmatpush1.msra.mxu0 0.0
        %829 = vmatprep.subr.mxu0 0.0
        %830 = vmatpush1.msra.mxu0 0.0
        %831 = vmatprep.subr.mxu0 0.0
        %832 = vmatpush1.msra.mxu0 0.0
        %833 = vmatprep.subr.mxu0 0.0
        %834 = vmatpush1.msra.mxu0 0.0
        %835 = vmatprep.subr.mxu0 0.0
        %836 = vmatpush1.msra.mxu0 0.0
        %837 = vmatprep.subr.mxu0 0.0
        %838 = vmatpush1.msra.mxu0 0.0
        %839 = vmatprep.subr.mxu0 0.0
        %840 = vmatpush1.msra.mxu0 0.0
        %841 = vmatprep.subr.mxu0 0.0
        %842 = vmatpush1.msra.mxu0 0.0
        %843 = vmatprep.subr.mxu0 0.0
        %844 = vmatpush1.msra.mxu0 0.0
        %845 = vmatprep.subr.mxu0 0.0
        %846 = vmatpush1.msra.mxu0 0.0
        %847 = vmatprep.subr.mxu0 0.0
        %848 = vmatpush1.msra.mxu0 0.0
        %849 = vmatprep.subr.mxu0 0.0
        %850 = vmatpush1.msra.mxu0 0.0
        %851 = vmatprep.subr.mxu0 0.0
        %852 = vmatpush1.msra.mxu0 0.0
        %853 = vmatprep.subr.mxu0 0.0
        %854 = vmatpush1.msra.mxu0 0.0
        %855 = vmatprep.subr.mxu0 0.0
        %856 = vmatpush1.msra.mxu0 0.0
        %857 = vmatprep.subr.mxu0 0.0
        %858 = vmatpush1.msra.mxu0 0.0
        %859 = vmatprep.subr.mxu0 0.0
        %860 = vmatpush1.msra.mxu0 0.0
        %861 = vmatprep.subr.mxu0 0.0
        %862 = vmatpush1.msra.mxu0 0.0
        %863 = vmatprep.subr.mxu0 0.0
        %864 = vmatpush1.msra.mxu0 0.0
        %865 = vmatprep.subr.mxu0 0.0
        %866 = vmatpush1.msra.mxu0 0.0
        %867 = vmatprep.subr.mxu0 0.0
        %868 = vmatpush1.msra.mxu0 0.0
        %869 = vmatprep.mubr.f32.mxu0 0.0
        %870 = vmatmul.mubr.f32.gmra.mrb[0].mxu0 %v803
        %v871 = vpop.f32.mrb[0].mxu0
        %v872 = vadd.f32 0.0, %v871
        %v873 = vpop.f32.mrb[0].mxu0
        %v874 = vadd.f32 0.0, %v873
        %875 = vdwg.mxu0
        %v876 = vmax.f32 %v638, %v794
        %v877 = vmax.f32 %v640, %v796
        %v878 = vmax.f32 %v716, %v872
        %v879 = vmax.f32 %v718, %v874
        %v880 = vmax.f32 %v876, %v877
        %v881 = vmax.f32 %v878, %v879
        %v882 = vmax.f32 %v880, %v881
        %883 = vmax.xlane.f32.xlu0 %v882
        %v884 = vpop.xlane.xlu0 %883
        %v885 = vsub.f32 %v638, %v884
        %v886 = vsub.f32 %v640, %v884
        %v887 = vsub.f32 %v716, %v884
        %v888 = vsub.f32 %v718, %v884
        %v889 = vsub.f32 %v794, %v884
        %v890 = vsub.f32 %v796, %v884
        %v891 = vsub.f32 %v872, %v884
        %v892 = vsub.f32 %v874, %v884
        %v893 = vmul.f32 %v885, 1.442695
        %v894 = vpow.pop %v893
        %v895 = vmul.f32 %v886, 1.442695
        %v896 = vpow.pop %v895
        %v897 = vmul.f32 %v887, 1.442695
        %v898 = vpow.pop %v897
        %v899 = vmul.f32 %v888, 1.442695
        %v900 = vpow.pop %v899
        %v901 = vmul.f32 %v889, 1.442695
        %v902 = vpow.pop %v901
        %v903 = vmul.f32 %v890, 1.442695
        %v904 = vpow.pop %v903
        %v905 = vmul.f32 %v891, 1.442695
        %v906 = vpow.pop %v905
        %v907 = vmul.f32 %v892, 1.442695
        %v908 = vpow.pop %v907
        %v909 = vadd.f32 %v894, %v896
        %v910 = vadd.f32 %v909, %v898
        %v911 = vadd.f32 %v910, %v900
        %v912 = vadd.f32 %v911, %v902
        %v913 = vadd.f32 %v912, %v904
        %v914 = vadd.f32 %v913, %v906
        %v915 = vadd.f32 %v914, %v908
        %916 = vadd.xlane.f32.xlu0 %v915
        %v917 = vpop.xlane.xlu0 %916
        %v918 = vrcp.pop %v917
        %v919 = vmul.f32 1.0, %v918
        %v920 = vmul.f32 %v894, %v919
        %v921 = vmul.f32 %v896, %v919
        %v922 = vmul.f32 %v898, %v919
        %v923 = vmul.f32 %v900, %v919
        %v924 = vmul.f32 %v902, %v919
        %v925 = vmul.f32 %v904, %v919
        %v926 = vmul.f32 %v906, %v919
        %v927 = vmul.f32 %v908, %v919
        %928 = vst [vmem:[%s337] sm:$0xff] %v920
        %929 = vst [vmem:[%s337 + $0x8] sm:$0xff] %v921
        %930 = vst [vmem:[%s337 + $0x10] sm:$0xff] %v922
        %931 = vst [vmem:[%s337 + $0x18] sm:$0xff] %v923
        %932 = vst [vmem:[%s337 + $0x20] sm:$0xff] %v924
        %933 = vst [vmem:[%s337 + $0x28] sm:$0xff] %v925
        %934 = vst [vmem:[%s337 + $0x30] sm:$0xff] %v926
        %935 = vst [vmem:[%s337 + $0x38] sm:$0xff] %v927
        %s936 = sand.u32 %s186, 1
        %s937 = scalar_lea.sflag [#allocation4], %s936
        %s938 = sand.u32 %s186, 1
        %s939 = smul.addr %s938, 64
        %s940 = scalar_lea.vmem [#allocation8], %s939
        // Predicated region
        $region57: #{tpu_custom_call.1} parent=43 // pred_check
          %p941 = pneg %p196
        $region58: #{tpu_custom_call.1} parent=43 // pred_check_branch
          %943 = sbr.rel (%p941) target = $region60
        $region59: #{tpu_custom_call.1} parent=43 // pred_region
          %s945 = ssub.s32 1024, 1024
          %946 = vsyncadd %s937, %s945
          %s947 = smul.addr %s31, 8
          %s948 = smul.addr %s30, 8
          %s949 = sadd.s32 %s947, %s948
          %s950 = smul.addr %s949, 128
          %s951 = scalar_lea.hbm %s6, %s950
          %s953 = sshll.u32 %s940, 4
          %s954 = int_to_ptr.vmem [resolvable:$true] %s953
          %956 = dma.vmem_to_hbm [thread:$0]  %s954, 1024, %s951, %s937
        $region60: #{tpu_custom_call.1} parent=43 // pred_fallthru
          _
      $region44: #{tpu_custom_call.1} parent=5 // pred_fallthru
        _
      %p957 = scmp.le.s32.totalorder 2, %s21
      // Predicated region
      $region61: #{tpu_custom_call.1} parent=5 // pred_check
        %p958 = pneg %p957
      $region62: #{tpu_custom_call.1} parent=5 // pred_check_branch
        %960 = sbr.rel (%p958) target = $region64
      $region63: #{tpu_custom_call.1} parent=5 // pred_region
        %s961 = ssub.s32 %s21, 2
        // Predicated region
        $region65: #{tpu_custom_call.1} parent=63 // pred_check
          %p962 = pneg %p202
        $region66: #{tpu_custom_call.1} parent=63 // pred_check_branch
          %964 = sbr.rel (%p962) target = $region68
        $region67: #{tpu_custom_call.1} parent=63 // pred_region
          %s965 = sand.u32 %s187, 1
          %s966 = scalar_lea.sflag [#allocation4], %s965
          %s967 = sand.u32 %s187, 1
          %s968 = smul.addr %s967, 64
          %s969 = scalar_lea.vmem [#allocation8], %s968
          %970 = dma.done %s966, 1024
        $region68: #{tpu_custom_call.1} parent=63 // pred_fallthru
          _
      $region64: #{tpu_custom_call.1} parent=5 // pred_fallthru
        _
    $region6: #{tpu_custom_call.1} parent=1 // loop_footer
      %s25 = sadd.s32 1, %s21
    $region7: #{tpu_custom_call.1} parent=1 // loop_footer_branch
      %20 = sbr.rel target = $region3
    $region8: #{tpu_custom_call.1} parent=1 // loop_exit
      _
    %971 = vsyncpa [#allocation3], 1
    %s972 = scalar_lea.sflag [#allocation3], 1
    %973 = vsyncpa %s972, 1
    %974 = vsyncpa [#allocation6], 1
    %s975 = scalar_lea.sflag [#allocation6], 1
    %976 = vsyncpa %s975, 1
    %977 = vsyncpa [#allocation4], 1
    %s978 = scalar_lea.sflag [#allocation4], 1
    %979 = vsyncpa %s978, 1

</llo_original>
